<compile_context>
chip_gen: v7x
topology: tpu7x:2x2x1
jax: 0.10.0
libtpu: 0.0.40
codegen_flags: <defaults>
</compile_context>

<pallas_src>
import functools

import jax
import jax.numpy as jnp
import numpy as np
from jax.experimental import pallas as pl
from jax.experimental.pallas import tpu as pltpu


# ------------------------------ tiling helpers ------------------------------

_PASS1_X_BLOCK_BYTES = 2 << 20     # per x block in pass 1 (double-buffered)
_PASS2_BLOCK_BYTES = 1 << 20       # per x / out block in pass 2
_FUSED_VMEM_BYTES = 24 << 20       # gate for the fused single-pass kernel


def _round_up(n, m):
    return ((n + m - 1) // m) * m


def _lane_tile(S, C, itemsize, budget_bytes):
    """Largest multiple-of-128 lane tile s.t. one (1, C, tile) block fits budget."""
    s128 = _round_up(S, 128)
    by_budget = max(128, (budget_bytes // (C * itemsize)) // 128 * 128)
    return min(s128, by_budget)


def _batch_tile(B, C, ts, itemsize, budget_bytes):
    return max(1, min(B, budget_bytes // (C * ts * itemsize)))


# ------------------------------ Pallas kernels ------------------------------

def _fused_kernel(x_ref, w1t_ref, b1_ref, w2t_ref, b2_ref, lam_ref, init_ref,
                  o_ref, *, inv_s, k, C):
    # x_ref / o_ref: (1, C, S) for one batch, resident in VMEM for the step.
    x = x_ref[...].astype(jnp.float32)
    # Global average pool over the lane (spatial) axis; keepdims keeps channel
    # on sublanes so no lane<->sublane relayout is ever needed.
    mean = jnp.sum(x, axis=-1, keepdims=True)[0] * inv_s          # (C, 1)
    # Tiny MLP in column-major form (weights pre-transposed on the host).
    h = jnp.dot(w1t_ref[...], mean,
                preferred_element_type=jnp.float32) + b1_ref[...]  # (Cr, 1)
    h = jnp.maximum(h, 0.0)
    t = jnp.dot(w2t_ref[...], h,
                preferred_element_type=jnp.float32) + b2_ref[...]  # (K, 1)
    theta = jnp.tanh(0.5 * t)                    # == 2*sigmoid(t) - 1 (EUP)
    coef = theta * lam_ref[...] + init_ref[...]  # (K, 1), row index = j*C + c
    # y = max_j(a_j * x + b_j): slope rows [0, kC), intercept rows [kC, 2kC).
    y = x * coef[0:C][None] + coef[k * C:(k + 1) * C][None]
    for j in range(1, k):
        y = jnp.maximum(
            y, x * coef[j * C:(j + 1) * C][None]
            + coef[(k + j) * C:(k + j + 1) * C][None])
    o_ref[...] = y.astype(o_ref.dtype)


def _theta_kernel(x_ref, w1_ref, b1_ref, w2_ref, b2_ref, lam_ref, init_ref,
                  coef_ref, acc_ref, *, inv_s, s_total, ts, mask_tail):
    # Grid = (batch [parallel], spatial tiles [arbitrary, innermost]).
    s = pl.program_id(1)

    @pl.when(s == 0)
    def _init():
        acc_ref[...] = jnp.zeros_like(acc_ref)

    x = x_ref[...].astype(jnp.float32)                          # (1, C, ts)
    if mask_tail:
        # Partial last lane tile: OOB lanes are unspecified -> zero them.
        lane = s * ts + jax.lax.broadcasted_iota(jnp.int32, x.shape, 2)
        x = jnp.where(lane < s_total, x, 0.0)

    # Accumulate with VPU adds into a 128-lane-wide scratch; the single XLU
    # lane reduce happens only in the finalize step (keeps pass 1 DMA-bound).
    acc = acc_ref[...]
    for c0 in range(0, ts, 128):
        acc = acc + x[:, :, c0:c0 + 128]
    acc_ref[...] = acc

    @pl.when(s == pl.num_programs(1) - 1)
    def _finalize():
        mean = jnp.sum(acc_ref[...], axis=-1) * inv_s           # (1, C)
        h = jnp.dot(mean, w1_ref[...],
                    preferred_element_type=jnp.float32) + b1_ref[...]
        h = jnp.maximum(h, 0.0)                                 # ReLU
        t = jnp.dot(h, w2_ref[...],
                    preferred_element_type=jnp.float32) + b2_ref[...]
        theta = jnp.tanh(0.5 * t)               # == 2*sigmoid(t) - 1 (EUP)
        coef = theta * lam_ref[...] + init_ref[...]             # (1, K)
        coef_ref[...] = coef[None]                              # (1, 1, K)


def _drelu_kernel(coef_ref, x_ref, o_ref, *, k):
    # coef_ref: (bb, C, 2k) resident across the S axis; x_ref/o_ref: (bb, C, ts).
    x = x_ref[...].astype(jnp.float32)
    c = coef_ref[...]
    y = x * c[:, :, 0:1] + c[:, :, k:k + 1]
    for j in range(1, k):
        y = jnp.maximum(y, x * c[:, :, j:j + 1] + c[:, :, k + j:k + j + 1])
    o_ref[...] = y.astype(o_ref.dtype)


# -------------------------------- wrappers ----------------------------------

def _fused_forward(x3, params, k, B, C, S, Cr, K, inv_s):
    f32 = jnp.float32
    # Column-major parameter layout (channel on sublanes).  In a real model
    # these tiny rearrangements would be precomputed once at load time.
    w1t = jnp.asarray(params["w1"], f32).T                        # (Cr, C)
    b1c = jnp.asarray(params["b1"], f32).reshape(Cr, 1)
    w2p = jnp.asarray(params["w2"], f32).reshape(Cr, C, 2 * k)
    w2t = jnp.transpose(w2p, (2, 1, 0)).reshape(K, Cr)            # row = j*C + c
    b2c = jnp.asarray(params["b2"], f32).reshape(C, 2 * k).T.reshape(K, 1)
    lamc = jnp.repeat(jnp.asarray(params["lambdas"], f32), C).reshape(K, 1)
    initc = jnp.repeat(jnp.asarray(params["init_v"], f32), C).reshape(K, 1)

    kern = functools.partial(_fused_kernel, inv_s=inv_s, k=k, C=C)
    return pl.pallas_call(
        kern,
        out_shape=jax.ShapeDtypeStruct((B, C, S), x3.dtype),
        grid=(B,),
        in_specs=[
            pl.BlockSpec((1, C, S), lambda b: (b, 0, 0)),
            pl.BlockSpec((Cr, C), lambda b: (0, 0)),
            pl.BlockSpec((Cr, 1), lambda b: (0, 0)),
            pl.BlockSpec((K, Cr), lambda b: (0, 0)),
            pl.BlockSpec((K, 1), lambda b: (0, 0)),
            pl.BlockSpec((K, 1), lambda b: (0, 0)),
            pl.BlockSpec((K, 1), lambda b: (0, 0)),
        ],
        out_specs=pl.BlockSpec((1, C, S), lambda b: (b, 0, 0)),
        compiler_params=pltpu.CompilerParams(
            dimension_semantics=("parallel",),
            vmem_limit_bytes=32 << 20),
    )(x3, w1t, b1c, w2t, b2c, lamc, initc)


def _two_pass_forward(x3, params, k, B, C, S, Cr, K, inv_s,
                      pass1_block_bytes, pass2_block_bytes):
    f32 = jnp.float32
    itemsize = x3.dtype.itemsize
    w1 = jnp.asarray(params["w1"], f32)                           # (C, Cr)
    b1 = jnp.asarray(params["b1"], f32).reshape(1, Cr)
    w2 = jnp.asarray(params["w2"], f32)                           # (Cr, K)
    b2 = jnp.asarray(params["b2"], f32).reshape(1, K)
    # Flat index c*2k + j picks lambdas[j], init_v[j] (matches theta.view(...)).
    lam_t = jnp.tile(jnp.asarray(params["lambdas"], f32), (C,)).reshape(1, K)
    init_t = jnp.tile(jnp.asarray(params["init_v"], f32), (C,)).reshape(1, K)

    # ---- pass 1: tiled GAP + tiny MLP -> per-(b, c) coefficients ------------
    ts1 = _lane_tile(S, C, itemsize, pass1_block_bytes)
    ns1 = pl.cdiv(S, ts1)
    mask_tail = (S % ts1) != 0

    kern1 = functools.partial(_theta_kernel, inv_s=inv_s, s_total=S, ts=ts1,
                              mask_tail=mask_tail)
    coefs = pl.pallas_call(
        kern1,
        out_shape=jax.ShapeDtypeStruct((B, 1, K), f32),
        grid=(B, ns1),
        in_specs=[
            pl.BlockSpec((1, C, ts1), lambda b, s: (b, 0, s)),
            pl.BlockSpec((C, Cr), lambda b, s: (0, 0)),
            pl.BlockSpec((1, Cr), lambda b, s: (0, 0)),
            pl.BlockSpec((Cr, K), lambda b, s: (0, 0)),
            pl.BlockSpec((1, K), lambda b, s: (0, 0)),
            pl.BlockSpec((1, K), lambda b, s: (0, 0)),
            pl.BlockSpec((1, K), lambda b, s: (0, 0)),
        ],
        out_specs=pl.BlockSpec((1, 1, K), lambda b, s: (b, 0, 0)),
        scratch_shapes=[pltpu.VMEM((1, C, 128), f32)],
        compiler_params=pltpu.CompilerParams(
            dimension_semantics=("parallel", "arbitrary"),
            vmem_limit_bytes=32 << 20),
    )(x3, w1, b1, w2, b2, lam_t, init_t)

    coefs = coefs.reshape(B, C, 2 * k)   # tiny; one resident block per batch

    # ---- pass 2: y = max_j(a_j * x + b_j), tiled over (batch, spatial) ------
    ts2 = _lane_tile(S, C, itemsize, pass2_block_bytes)
    bb2 = _batch_tile(B, C, ts2, itemsize, pass2_block_bytes)
    grid2 = (pl.cdiv(B, bb2), pl.cdiv(S, ts2))

    kern2 = functools.partial(_drelu_kernel, k=k)
    out3 = pl.pallas_call(
        kern2,
        out_shape=jax.ShapeDtypeStruct((B, C, S), x3.dtype),
        grid=grid2,
        in_specs=[
            pl.BlockSpec((bb2, C, 2 * k), lambda b, s: (b, 0, 0)),
            pl.BlockSpec((bb2, C, ts2), lambda b, s: (b, 0, s)),
        ],
        out_specs=pl.BlockSpec((bb2, C, ts2), lambda b, s: (b, 0, s)),
        compiler_params=pltpu.CompilerParams(
            dimension_semantics=("parallel", "parallel"),
            vmem_limit_bytes=32 << 20),
    )(coefs, x3)
    # TODO(synk): under a jit+donation boundary, alias x3 to the pass-2 output
    # (input_output_aliases={1: 0}) to drop one |x|-sized HBM allocation; done
    # eagerly it would only force XLA to insert a defensive copy.
    return out3


def dynamic_relu_b2d(x, params, k=2, *, force_two_pass=False,
                     pass1_block_bytes=_PASS1_X_BLOCK_BYTES,
                     pass2_block_bytes=_PASS2_BLOCK_BYTES):
    B, C, H, W = x.shape
    S = H * W
    Cr = params["w1"].shape[1]
    K = 2 * k * C
    inv_s = 1.0 / float(S)

    x3 = x.reshape(B, C, S)          # keep input dtype; compute in f32 in-kernel
    itemsize = x3.dtype.itemsize

    # Fused path whenever one batch's double-buffered (in + out) slab plus the
    # (double-buffered) weights fit a conservative 24 MiB VMEM budget.
    fused_vmem_est = (4 * C * S * itemsize
                      + 8 * (Cr * C + K * Cr + Cr + 3 * K))
    if (not force_two_pass) and fused_vmem_est <= _FUSED_VMEM_BYTES:
        out3 = _fused_forward(x3, params, k, B, C, S, Cr, K, inv_s)
    else:
        out3 = _two_pass_forward(x3, params, k, B, C, S, Cr, K, inv_s,
                                 pass1_block_bytes, pass2_block_bytes)
    return out3.reshape(B, C, H, W)


# ---------------------------- pure-JAX reference -----------------------------

def ref_forward(x, params, k=2):
    B, C, H, W = x.shape
    theta = jnp.mean(jnp.mean(x, axis=-1), axis=-1)               # (B, C)
    h = jnp.maximum(theta @ params["w1"] + params["b1"], 0.0)
    theta = 2.0 * jax.nn.sigmoid(h @ params["w2"] + params["b2"]) - 1.0
    relu_coefs = (theta.reshape(B, C, 2 * k) * params["lambdas"]
                  + params["init_v"])                             # (B, C, 2k)
    x_perm = jnp.transpose(x, (2, 3, 0, 1))[..., None]            # (H,W,B,C,1)
    out = x_perm * relu_coefs[:, :, :k] + relu_coefs[:, :, k:]
    return jnp.transpose(jnp.max(out, axis=-1), (2, 3, 0, 1))     # (B,C,H,W)


# --------------------------------- main --------------------------------------

if __name__ == "__main__":
    def make_params(C, reduction, k, key):
        Cr = C // reduction
        k1, k2, k3, k4 = jax.random.split(key, 4)
        return {
            "w1": 0.2 * jax.random.normal(k1, (C, Cr), dtype=jnp.float32),
            "b1": 0.1 * jax.random.normal(k2, (1, Cr), dtype=jnp.float32),
            "w2": 0.2 * jax.random.normal(k3, (Cr, 2 * k * C), dtype=jnp.float32),
            "b2": 0.1 * jax.random.normal(k4, (1, 2 * k * C), dtype=jnp.float32),
            "lambdas": jnp.array([1.0] * k + [0.5] * k, dtype=jnp.float32),
            "init_v": jnp.array([1.0] + [0.0] * (2 * k - 1), dtype=jnp.float32),
        }

    key = jax.random.PRNGKey(0)
    kp, kx1, kx2, kx3 = jax.random.split(key, 4)
    k = 2
    C = 8
    params = make_params(C, 4, k, kp)

    # 1) main shape -> fused single-pass path.
    x1 = jax.random.normal(kx1, (2, C, 16, 16), dtype=jnp.float32)
    out1 = jax.block_until_ready(dynamic_relu_b2d(x1, params, k=k))
    np.testing.assert_allclose(np.asarray(out1),
                               np.asarray(ref_forward(x1, params, k=k)),
                               rtol=1e-5, atol=1e-5)

    # 2) ragged spatial size (S = 63, not a multiple of 128) through the fused
    #    path: no host padding / slicing anywhere.
    x2 = jax.random.normal(kx2, (2, C, 7, 9), dtype=jnp.float32)
    out2 = jax.block_until_ready(dynamic_relu_b2d(x2, params, k=k))
    np.testing.assert_allclose(np.asarray(out2),
                               np.asarray(ref_forward(x2, params, k=k)),
                               rtol=1e-5, atol=1e-5)

    # 3) force the tiled two-pass path with tiny block budgets so multi-tile
    #    accumulation, tail masking and partial output blocks all get hit
    #    (S = 289 -> three 128-lane tiles).
    x3 = jax.random.normal(kx3, (3, C, 17, 17), dtype=jnp.float32)
    out3 = jax.block_until_ready(
        dynamic_relu_b2d(x3, params, k=k, force_two_pass=True,
                         pass1_block_bytes=C * 128 * 4,
                         pass2_block_bytes=C * 128 * 4))
    np.testing.assert_allclose(np.asarray(out3),
                               np.asarray(ref_forward(x3, params, k=k)),
                               rtol=1e-5, atol=1e-5)

    print("KERNEL_OK")
</pallas_src>

<mosaic_0001>
module attributes {stable_mosaic.version = 11 : i64} {
  func.func @_fused_kernel(%arg0: i32, %arg1: memref<1x8x256xf32, #tpu.memory_space<vmem>>, %arg2: memref<2x8xf32, #tpu.memory_space<vmem>>, %arg3: memref<2x1xf32, #tpu.memory_space<vmem>>, %arg4: memref<32x2xf32, #tpu.memory_space<vmem>>, %arg5: memref<32x1xf32, #tpu.memory_space<vmem>>, %arg6: memref<32x1xf32, #tpu.memory_space<vmem>>, %arg7: memref<32x1xf32, #tpu.memory_space<vmem>>, %arg8: memref<1x8x256xf32, #tpu.memory_space<vmem>>) attributes {dimension_semantics = [#tpu.dimension_semantics<parallel>], iteration_bounds = array<i64: 2>, scalar_prefetch = 0 : i64, scratch_operands = 0 : i64, tpu.core_type = #tpu.core_type<tc>, window_params = [{transform_indices = @transform_0, window_bounds = array<i64: 1, 8, 256>}, {pipeline_mode = #tpu.pipeline_mode<synchronous>, transform_indices = @transform_1, window_bounds = array<i64: 2, 8>}, {pipeline_mode = #tpu.pipeline_mode<synchronous>, transform_indices = @transform_2, window_bounds = array<i64: 2, 1>}, {pipeline_mode = #tpu.pipeline_mode<synchronous>, transform_indices = @transform_3, window_bounds = array<i64: 32, 2>}, {pipeline_mode = #tpu.pipeline_mode<synchronous>, transform_indices = @transform_4, window_bounds = array<i64: 32, 1>}, {pipeline_mode = #tpu.pipeline_mode<synchronous>, transform_indices = @transform_5, window_bounds = array<i64: 32, 1>}, {pipeline_mode = #tpu.pipeline_mode<synchronous>, transform_indices = @transform_6, window_bounds = array<i64: 32, 1>}, {transform_indices = @transform_7, window_bounds = array<i64: 1, 8, 256>}]} {
    %c0 = arith.constant 0 : index
    %c0_0 = arith.constant 0 : index
    %c0_1 = arith.constant 0 : index
    %0 = vector.load %arg1[%c0, %c0_0, %c0_1] : memref<1x8x256xf32, #tpu.memory_space<vmem>>, vector<1x8x256xf32>
    %cst = arith.constant dense<0.000000e+00> : vector<1x8xf32>
    %1 = vector.multi_reduction <add>, %0, %cst [2] : vector<1x8x256xf32> to vector<1x8xf32>
    %2 = vector.shape_cast %1 : vector<1x8xf32> to vector<1x8x1xf32>
    %3 = vector.shape_cast %2 : vector<1x8x1xf32> to vector<8x1xf32>
    %cst_2 = arith.constant 3.906250e-03 : f32
    %4 = vector.broadcast %cst_2 : f32 to vector<8x1xf32>
    %5 = arith.mulf %3, %4 : vector<8x1xf32>
    %c0_3 = arith.constant 0 : index
    %c0_4 = arith.constant 0 : index
    %6 = vector.load %arg2[%c0_3, %c0_4] : memref<2x8xf32, #tpu.memory_space<vmem>>, vector<2x8xf32>
    %cst_5 = arith.constant dense<0.000000e+00> : vector<2x1xf32>
    %7 = tpu.matmul %6, %5, %cst_5 {dimension_numbers = #tpu.dot_dimension_numbers<[1], [0], [0], [1], [0, 0, 1, 1], [], []>} : vector<2x8xf32>, vector<8x1xf32>, vector<2x1xf32> -> vector<2x1xf32>
    %c0_6 = arith.constant 0 : index
    %c0_7 = arith.constant 0 : index
    %8 = vector.load %arg3[%c0_6, %c0_7] : memref<2x1xf32, #tpu.memory_space<vmem>>, vector<2x1xf32>
    %9 = arith.addf %7, %8 : vector<2x1xf32>
    %cst_8 = arith.constant 0.000000e+00 : f32
    %10 = vector.broadcast %cst_8 : f32 to vector<2x1xf32>
    %11 = arith.maximumf %9, %10 : vector<2x1xf32>
    %c0_9 = arith.constant 0 : index
    %c0_10 = arith.constant 0 : index
    %12 = vector.load %arg4[%c0_9, %c0_10] : memref<32x2xf32, #tpu.memory_space<vmem>>, vector<32x2xf32>
    %cst_11 = arith.constant dense<0.000000e+00> : vector<32x1xf32>
    %13 = tpu.matmul %12, %11, %cst_11 {dimension_numbers = #tpu.dot_dimension_numbers<[1], [0], [0], [1], [0, 0, 1, 1], [], []>} : vector<32x2xf32>, vector<2x1xf32>, vector<32x1xf32> -> vector<32x1xf32>
    %c0_12 = arith.constant 0 : index
    %c0_13 = arith.constant 0 : index
    %14 = vector.load %arg5[%c0_12, %c0_13] : memref<32x1xf32, #tpu.memory_space<vmem>>, vector<32x1xf32>
    %15 = arith.addf %13, %14 : vector<32x1xf32>
    %cst_14 = arith.constant 5.000000e-01 : f32
    %16 = vector.broadcast %cst_14 : f32 to vector<32x1xf32>
    %17 = arith.mulf %16, %15 : vector<32x1xf32>
    %18 = math.tanh %17 : vector<32x1xf32>
    %c0_15 = arith.constant 0 : index
    %c0_16 = arith.constant 0 : index
    %19 = vector.load %arg6[%c0_15, %c0_16] : memref<32x1xf32, #tpu.memory_space<vmem>>, vector<32x1xf32>
    %20 = arith.mulf %18, %19 : vector<32x1xf32>
    %c0_17 = arith.constant 0 : index
    %c0_18 = arith.constant 0 : index
    %21 = vector.load %arg7[%c0_17, %c0_18] : memref<32x1xf32, #tpu.memory_space<vmem>>, vector<32x1xf32>
    %22 = arith.addf %20, %21 : vector<32x1xf32>
    %23 = vector.extract_strided_slice %22 {offsets = [0, 0], sizes = [8, 1], strides = [1, 1]} : vector<32x1xf32> to vector<8x1xf32>
    %24 = vector.shape_cast %23 : vector<8x1xf32> to vector<1x8x1xf32>
    %25 = vector.broadcast %24 : vector<1x8x1xf32> to vector<1x8x256xf32>
    %26 = arith.mulf %0, %25 : vector<1x8x256xf32>
    %27 = vector.extract_strided_slice %22 {offsets = [16, 0], sizes = [8, 1], strides = [1, 1]} : vector<32x1xf32> to vector<8x1xf32>
    %28 = vector.shape_cast %27 : vector<8x1xf32> to vector<1x8x1xf32>
    %29 = vector.broadcast %28 : vector<1x8x1xf32> to vector<1x8x256xf32>
    %30 = arith.addf %26, %29 : vector<1x8x256xf32>
    %31 = vector.extract_strided_slice %22 {offsets = [8, 0], sizes = [8, 1], strides = [1, 1]} : vector<32x1xf32> to vector<8x1xf32>
    %32 = vector.shape_cast %31 : vector<8x1xf32> to vector<1x8x1xf32>
    %33 = vector.broadcast %32 : vector<1x8x1xf32> to vector<1x8x256xf32>
    %34 = arith.mulf %0, %33 : vector<1x8x256xf32>
    %35 = vector.extract_strided_slice %22 {offsets = [24, 0], sizes = [8, 1], strides = [1, 1]} : vector<32x1xf32> to vector<8x1xf32>
    %36 = vector.shape_cast %35 : vector<8x1xf32> to vector<1x8x1xf32>
    %37 = vector.broadcast %36 : vector<1x8x1xf32> to vector<1x8x256xf32>
    %38 = arith.addf %34, %37 : vector<1x8x256xf32>
    %39 = arith.maximumf %30, %38 : vector<1x8x256xf32>
    %c0_19 = arith.constant 0 : index
    %c0_20 = arith.constant 0 : index
    %c0_21 = arith.constant 0 : index
    %40 = vector.load %arg8[%c0_19, %c0_20, %c0_21] : memref<1x8x256xf32, #tpu.memory_space<vmem>>, vector<1x8x256xf32>
    tpu.vector_store %arg8[%c0_19, %c0_20, %c0_21], %39 {strides = array<i32>} : memref<1x8x256xf32, #tpu.memory_space<vmem>>, vector<1x8x256xf32>,
    return
  }
  func.func @transform_0(%arg0: i32) -> (i32, i32, i32) {
    %c0_i32 = arith.constant 0 : i32
    %c0_i32_0 = arith.constant 0 : i32
    %c0_i32_1 = arith.constant 0 : i32
    return %arg0, %c0_i32, %c0_i32_0 : i32, i32, i32
  }
  func.func @transform_1(%arg0: i32) -> (i32, i32) {
    %c0_i32 = arith.constant 0 : i32
    %c0_i32_0 = arith.constant 0 : i32
    %c0_i32_1 = arith.constant 0 : i32
    return %c0_i32, %c0_i32_0 : i32, i32
  }
  func.func @transform_2(%arg0: i32) -> (i32, i32) {
    %c0_i32 = arith.constant 0 : i32
    %c0_i32_0 = arith.constant 0 : i32
    %c0_i32_1 = arith.constant 0 : i32
    return %c0_i32, %c0_i32_0 : i32, i32
  }
  func.func @transform_3(%arg0: i32) -> (i32, i32) {
    %c0_i32 = arith.constant 0 : i32
    %c0_i32_0 = arith.constant 0 : i32
    %c0_i32_1 = arith.constant 0 : i32
    return %c0_i32, %c0_i32_0 : i32, i32
  }
  func.func @transform_4(%arg0: i32) -> (i32, i32) {
    %c0_i32 = arith.constant 0 : i32
    %c0_i32_0 = arith.constant 0 : i32
    %c0_i32_1 = arith.constant 0 : i32
    return %c0_i32, %c0_i32_0 : i32, i32
  }
  func.func @transform_5(%arg0: i32) -> (i32, i32) {
    %c0_i32 = arith.constant 0 : i32
    %c0_i32_0 = arith.constant 0 : i32
    %c0_i32_1 = arith.constant 0 : i32
    return %c0_i32, %c0_i32_0 : i32, i32
  }
  func.func @transform_6(%arg0: i32) -> (i32, i32) {
    %c0_i32 = arith.constant 0 : i32
    %c0_i32_0 = arith.constant 0 : i32
    %c0_i32_1 = arith.constant 0 : i32
    return %c0_i32, %c0_i32_0 : i32, i32
  }
  func.func @transform_7(%arg0: i32) -> (i32, i32, i32) {
    %c0_i32 = arith.constant 0 : i32
    %c0_i32_0 = arith.constant 0 : i32
    %c0_i32_1 = arith.constant 0 : i32
    return %arg0, %c0_i32, %c0_i32_0 : i32, i32, i32
  }
}

</mosaic_0001>

<llo_original>
// kernel: tpu_custom_call.1
$region0: #{tpu_custom_call.1}
  #allocation0 [shape = 'u32[]', space=smem, size = 0x4, offset = 0x4, fixed_abs, tag = 'smem constant byte address 0x4 - core index']
  #allocation1 [shape = 'u32[144,128]{1,0:T(1,128)}', space=vmem, size = 0x12000, scoped, tag = 'internal scratch']
  %s0 = inlined_call_operand.vmem [shape: f32[2,8,256], index: 0, kind: input, shape index: {}]
  %s1 = inlined_call_operand.vmem [shape: f32[2,8], index: 1, kind: input, shape index: {}]
  %s2 = inlined_call_operand.vmem [shape: f32[2,1], index: 2, kind: input, shape index: {}]
  %s3 = inlined_call_operand.vmem [shape: f32[32,2], index: 3, kind: input, shape index: {}]
  %s4 = inlined_call_operand.vmem [shape: f32[32,1], index: 4, kind: input, shape index: {}]
  %s5 = inlined_call_operand.vmem [shape: f32[32,1], index: 5, kind: input, shape index: {}]
  %s6 = inlined_call_operand.vmem [shape: f32[32,1], index: 6, kind: input, shape index: {}]
  %s7 = inlined_call_operand.hbm [shape: f32[2,8,256], index: 7, kind: output, shape index: {}]
  %s8 = sld [smem:[#allocation0]]
  $region61: #{tpu_custom_call.1} parent=0
    _
  %s10 = ssub.s32 1, %s8
  %s11 = scalar_select 0, %s10, %s8
  $region1: #{tpu_custom_call.1} parent=0
    #allocation2 [shape = 'u8[16384]{0}', space=vmem, size = 0x4000, scoped, tag = 'output window, operand 0']
    #allocation3 [shape = 's32[2]{0}', space=sflag, size = 0x8, scoped, tag = 'scoped memory for tpu_custom_call.1']
    %12 = vsyncpa [#allocation3], 0
    %s13 = scalar_lea.sflag [#allocation3], 1
    %14 = vsyncpa %s13, 0
    loop: start=0, step=1, limit=4
    $region2: #{tpu_custom_call.1} parent=1 // loop_pre_header
      _
    $region3: #{tpu_custom_call.1} parent=1 // loop_header
      %s16 = sphi 0, %s20
      %p17 = scmp.ge.s32.totalorder %s16, 4
      %s26 = sphi 0, %s28
      %s29 = sphi 0, %s26
      %s30 = sphi 0, %s29
      %s46 = sphi 0, %s30
      %s50 = sphi 0, %s50
      %s52 = sphi 0, %s50
      %s53 = sphi 0, %s52
      %s67 = sphi 0, %s53
      %s71 = sphi 0, %s71
      %s73 = sphi 0, %s71
      %s74 = sphi 0, %s73
      %s88 = sphi 0, %s74
      %s92 = sphi 0, %s92
      %s94 = sphi 0, %s92
      %s95 = sphi 0, %s94
      %s109 = sphi 0, %s95
      %s113 = sphi 0, %s113
      %s115 = sphi 0, %s113
      %s116 = sphi 0, %s115
      %s130 = sphi 0, %s116
      %s134 = sphi 0, %s134
      %s136 = sphi 0, %s134
      %s137 = sphi 0, %s136
      %s151 = sphi 0, %s137
      %s155 = sphi 0, %s155
      %s157 = sphi 0, %s155
      %s158 = sphi 0, %s157
      %s172 = sphi 0, %s158
      %s178 = sphi 0, %s180
      %s181 = sphi 0, %s178
      %s182 = sphi 0, %s181
      %s198 = sphi 0, %s182
    $region4: #{tpu_custom_call.1} parent=1 // loop_header_branch
      %19 = sbr.rel (%p17) target = $region8
    $region5: #{tpu_custom_call.1} parent=1 // loop_body
      %s21 = ssub.s32 %s16, 1
      %s22 = ssub.s32 %s16, 2
      %s23 = sadd.s32 %s16, 1
      %s24 = ssub.s32 %s16, %s23
      %p25 = scmp.eq.s32.totalorder %s24, 0
      %s27 = sadd.s32 %s26, 1
      %s28 = scalar_select %p25, %s26, %s27
      %p31 = pneg %p25
      %p32 = scmp.eq.s32.totalorder %s16, 1
      %p33 = por %p31, %p32
      %p34 = scmp.ne.s32.totalorder %s26, %s29
      %p35 = scmp.eq.s32.totalorder %s16, 0
      %p36 = por %p34, %p35
      %p37 = scmp.ne.s32.totalorder %s26, %s29
      %p38 = scmp.eq.s32.totalorder %s21, 1
      %p39 = por %p37, %p38
      %p40 = scmp.ne.s32.totalorder %s29, %s30
      %p41 = scmp.eq.s32.totalorder %s21, 0
      %p42 = por %p40, %p41
      %p43 = scmp.ne.s32.totalorder %s29, %s30
      %p44 = scmp.eq.s32.totalorder %s22, 1
      %p45 = por %p43, %p44
      %p47 = scmp.ne.s32.totalorder %s30, %s46
      %p48 = scmp.eq.s32.totalorder %s22, 0
      %p49 = por %p47, %p48
      %s51 = sadd.s32 %s50, 1
      %p54 = scmp.eq.s32.totalorder %s16, 1
      %p55 = scmp.ne.s32.totalorder %s50, %s52
      %p56 = scmp.eq.s32.totalorder %s16, 0
      %p57 = por %p55, %p56
      %p58 = scmp.ne.s32.totalorder %s50, %s52
      %p59 = scmp.eq.s32.totalorder %s21, 1
      %p60 = por %p58, %p59
      %p61 = scmp.ne.s32.totalorder %s52, %s53
      %p62 = scmp.eq.s32.totalorder %s21, 0
      %p63 = por %p61, %p62
      %p64 = scmp.ne.s32.totalorder %s52, %s53
      %p65 = scmp.eq.s32.totalorder %s22, 1
      %p66 = por %p64, %p65
      %p68 = scmp.ne.s32.totalorder %s53, %s67
      %p69 = scmp.eq.s32.totalorder %s22, 0
      %p70 = por %p68, %p69
      %s72 = sadd.s32 %s71, 1
      %p75 = scmp.eq.s32.totalorder %s16, 1
      %p76 = scmp.ne.s32.totalorder %s71, %s73
      %p77 = scmp.eq.s32.totalorder %s16, 0
      %p78 = por %p76, %p77
      %p79 = scmp.ne.s32.totalorder %s71, %s73
      %p80 = scmp.eq.s32.totalorder %s21, 1
      %p81 = por %p79, %p80
      %p82 = scmp.ne.s32.totalorder %s73, %s74
      %p83 = scmp.eq.s32.totalorder %s21, 0
      %p84 = por %p82, %p83
      %p85 = scmp.ne.s32.totalorder %s73, %s74
      %p86 = scmp.eq.s32.totalorder %s22, 1
      %p87 = por %p85, %p86
      %p89 = scmp.ne.s32.totalorder %s74, %s88
      %p90 = scmp.eq.s32.totalorder %s22, 0
      %p91 = por %p89, %p90
      %s93 = sadd.s32 %s92, 1
      %p96 = scmp.eq.s32.totalorder %s16, 1
      %p97 = scmp.ne.s32.totalorder %s92, %s94
      %p98 = scmp.eq.s32.totalorder %s16, 0
      %p99 = por %p97, %p98
      %p100 = scmp.ne.s32.totalorder %s92, %s94
      %p101 = scmp.eq.s32.totalorder %s21, 1
      %p102 = por %p100, %p101
      %p103 = scmp.ne.s32.totalorder %s94, %s95
      %p104 = scmp.eq.s32.totalorder %s21, 0
      %p105 = por %p103, %p104
      %p106 = scmp.ne.s32.totalorder %s94, %s95
      %p107 = scmp.eq.s32.totalorder %s22, 1
      %p108 = por %p106, %p107
      %p110 = scmp.ne.s32.totalorder %s95, %s109
      %p111 = scmp.eq.s32.totalorder %s22, 0
      %p112 = por %p110, %p111
      %s114 = sadd.s32 %s113, 1
      %p117 = scmp.eq.s32.totalorder %s16, 1
      %p118 = scmp.ne.s32.totalorder %s113, %s115
      %p119 = scmp.eq.s32.totalorder %s16, 0
      %p120 = por %p118, %p119
      %p121 = scmp.ne.s32.totalorder %s113, %s115
      %p122 = scmp.eq.s32.totalorder %s21, 1
      %p123 = por %p121, %p122
      %p124 = scmp.ne.s32.totalorder %s115, %s116
      %p125 = scmp.eq.s32.totalorder %s21, 0
      %p126 = por %p124, %p125
      %p127 = scmp.ne.s32.totalorder %s115, %s116
      %p128 = scmp.eq.s32.totalorder %s22, 1
      %p129 = por %p127, %p128
      %p131 = scmp.ne.s32.totalorder %s116, %s130
      %p132 = scmp.eq.s32.totalorder %s22, 0
      %p133 = por %p131, %p132
      %s135 = sadd.s32 %s134, 1
      %p138 = scmp.eq.s32.totalorder %s16, 1
      %p139 = scmp.ne.s32.totalorder %s134, %s136
      %p140 = scmp.eq.s32.totalorder %s16, 0
      %p141 = por %p139, %p140
      %p142 = scmp.ne.s32.totalorder %s134, %s136
      %p143 = scmp.eq.s32.totalorder %s21, 1
      %p144 = por %p142, %p143
      %p145 = scmp.ne.s32.totalorder %s136, %s137
      %p146 = scmp.eq.s32.totalorder %s21, 0
      %p147 = por %p145, %p146
      %p148 = scmp.ne.s32.totalorder %s136, %s137
      %p149 = scmp.eq.s32.totalorder %s22, 1
      %p150 = por %p148, %p149
      %p152 = scmp.ne.s32.totalorder %s137, %s151
      %p153 = scmp.eq.s32.totalorder %s22, 0
      %p154 = por %p152, %p153
      %s156 = sadd.s32 %s155, 1
      %p159 = scmp.eq.s32.totalorder %s16, 1
      %p160 = scmp.ne.s32.totalorder %s155, %s157
      %p161 = scmp.eq.s32.totalorder %s16, 0
      %p162 = por %p160, %p161
      %p163 = scmp.ne.s32.totalorder %s155, %s157
      %p164 = scmp.eq.s32.totalorder %s21, 1
      %p165 = por %p163, %p164
      %p166 = scmp.ne.s32.totalorder %s157, %s158
      %p167 = scmp.eq.s32.totalorder %s21, 0
      %p168 = por %p166, %p167
      %p169 = scmp.ne.s32.totalorder %s157, %s158
      %p170 = scmp.eq.s32.totalorder %s22, 1
      %p171 = por %p169, %p170
      %p173 = scmp.ne.s32.totalorder %s158, %s172
      %p174 = scmp.eq.s32.totalorder %s22, 0
      %p175 = por %p173, %p174
      %s176 = ssub.s32 %s16, %s23
      %p177 = scmp.eq.s32.totalorder %s176, 0
      %s179 = sadd.s32 %s178, 1
      %s180 = scalar_select %p177, %s178, %s179
      %p183 = pneg %p177
      %p184 = scmp.eq.s32.totalorder %s16, 1
      %p185 = por %p183, %p184
      %p186 = scmp.ne.s32.totalorder %s178, %s181
      %p187 = scmp.eq.s32.totalorder %s16, 0
      %p188 = por %p186, %p187
      %p189 = scmp.ne.s32.totalorder %s178, %s181
      %p190 = scmp.eq.s32.totalorder %s21, 1
      %p191 = por %p189, %p190
      %p192 = scmp.ne.s32.totalorder %s181, %s182
      %p193 = scmp.eq.s32.totalorder %s21, 0
      %p194 = por %p192, %p193
      %p195 = scmp.ne.s32.totalorder %s181, %s182
      %p196 = scmp.eq.s32.totalorder %s22, 1
      %p197 = por %p195, %p196
      %p199 = scmp.ne.s32.totalorder %s182, %s198
      %p200 = scmp.eq.s32.totalorder %s22, 0
      %p201 = por %p199, %p200
      %p202 = scmp.le.s32.totalorder 1, %s16
      %p203 = scmp.lt.s32.totalorder %s16, 3
      %p204 = pnand %p202, %p203
      %p205 = pneg %p204
      // Predicated region
      $region9: #{tpu_custom_call.1} parent=5 // pred_check
        _
      $region10: #{tpu_custom_call.1} parent=5 // pred_check_branch
        %207 = sbr.rel (%p204) target = $region12
      $region11: #{tpu_custom_call.1} parent=5 // pred_region
        %s208 = ssub.s32 %s16, 1
        // Predicated region
        $region13: #{tpu_custom_call.1} parent=11 // pred_check
          %p209 = pneg %p63
        $region14: #{tpu_custom_call.1} parent=11 // pred_check_branch
          %211 = sbr.rel (%p209) target = $region16
        $region15: #{tpu_custom_call.1} parent=11 // pred_region
          _
        $region16: #{tpu_custom_call.1} parent=11 // pred_fallthru
          _
        // Predicated region
        $region17: #{tpu_custom_call.1} parent=11 // pred_check
          %p212 = pneg %p84
        $region18: #{tpu_custom_call.1} parent=11 // pred_check_branch
          %214 = sbr.rel (%p212) target = $region20
        $region19: #{tpu_custom_call.1} parent=11 // pred_region
          _
        $region20: #{tpu_custom_call.1} parent=11 // pred_fallthru
          _
        // Predicated region
        $region21: #{tpu_custom_call.1} parent=11 // pred_check
          %p215 = pneg %p105
        $region22: #{tpu_custom_call.1} parent=11 // pred_check_branch
          %217 = sbr.rel (%p215) target = $region24
        $region23: #{tpu_custom_call.1} parent=11 // pred_region
          _
        $region24: #{tpu_custom_call.1} parent=11 // pred_fallthru
          _
        // Predicated region
        $region25: #{tpu_custom_call.1} parent=11 // pred_check
          %p218 = pneg %p126
        $region26: #{tpu_custom_call.1} parent=11 // pred_check_branch
          %220 = sbr.rel (%p218) target = $region28
        $region27: #{tpu_custom_call.1} parent=11 // pred_region
          _
        $region28: #{tpu_custom_call.1} parent=11 // pred_fallthru
          _
        // Predicated region
        $region29: #{tpu_custom_call.1} parent=11 // pred_check
          %p221 = pneg %p147
        $region30: #{tpu_custom_call.1} parent=11 // pred_check_branch
          %223 = sbr.rel (%p221) target = $region32
        $region31: #{tpu_custom_call.1} parent=11 // pred_region
          _
        $region32: #{tpu_custom_call.1} parent=11 // pred_fallthru
          _
        // Predicated region
        $region33: #{tpu_custom_call.1} parent=11 // pred_check
          %p224 = pneg %p168
        $region34: #{tpu_custom_call.1} parent=11 // pred_check_branch
          %226 = sbr.rel (%p224) target = $region36
        $region35: #{tpu_custom_call.1} parent=11 // pred_region
          _
        $region36: #{tpu_custom_call.1} parent=11 // pred_fallthru
          _
      $region12: #{tpu_custom_call.1} parent=5 // pred_fallthru
        _
      %p227 = scmp.lt.s32.totalorder %s16, 2
      // Predicated region
      $region37: #{tpu_custom_call.1} parent=5 // pred_check
        %p228 = pneg %p227
      $region38: #{tpu_custom_call.1} parent=5 // pred_check_branch
        %230 = sbr.rel (%p228) target = $region40
      $region39: #{tpu_custom_call.1} parent=5 // pred_region
        // Predicated region
        $region41: #{tpu_custom_call.1} parent=39 // pred_check
          %p231 = pneg %p36
        $region42: #{tpu_custom_call.1} parent=39 // pred_check_branch
          %233 = sbr.rel (%p231) target = $region44
        $region43: #{tpu_custom_call.1} parent=39 // pred_region
          %p234 = scmp.lt.s32.totalorder %s16, 1
          %s235 = scalar_select %p234, %s16, 1
          %s236 = smul.addr %s235, 2
          %s237 = smul.addr %s236, 8
          %s238 = scalar_lea.vmem %s0, %s237
        $region44: #{tpu_custom_call.1} parent=39 // pred_fallthru
          _
      $region40: #{tpu_custom_call.1} parent=5 // pred_fallthru
        _
      %p239 = scmp.le.s32.totalorder 1, %s16
      %p240 = scmp.lt.s32.totalorder %s16, 3
      %p241 = pnand %p239, %p240
      %p242 = pneg %p241
      // Predicated region
      $region45: #{tpu_custom_call.1} parent=5 // pred_check
        _
      $region46: #{tpu_custom_call.1} parent=5 // pred_check_branch
        %244 = sbr.rel (%p241) target = $region48
      $region47: #{tpu_custom_call.1} parent=5 // pred_region
        %s245 = ssub.s32 %s16, 1
        %p246 = scmp.lt.s32.totalorder %s21, 1
        %s247 = scalar_select %p246, %s21, 1
        %s248 = smul.addr %s247, 2
        %s249 = smul.addr %s248, 8
        %s250 = scalar_lea.vmem %s0, %s249
        %p251 = pneg %p42
        %p252 = pneg %p39
        %p253 = pneg %p63
        %p254 = pneg %p60
        %p255 = pneg %p84
        %p256 = pneg %p81
        %p257 = pneg %p105
        %p258 = pneg %p102
        %p259 = pneg %p126
        %p260 = pneg %p123
        %p261 = pneg %p147
        %p262 = pneg %p144
        %p263 = pneg %p168
        %p264 = pneg %p165
        %p265 = pneg %p194
        %p266 = pneg %p191
        %s267 = sand.u32 %s181, 1
        %s268 = scalar_lea.sflag [#allocation3], %s267
        %s269 = sand.u32 %s181, 1
        %s270 = smul.addr %s269, 16
        %s271 = scalar_lea.vmem [#allocation2], %s270
        %p272 = scmp.lt.s32.totalorder %s21, 1
        %s273 = scalar_select %p272, %s21, 1
        %s274 = smul.addr %s273, 2
        %s275 = smul.addr %s274, 8
        %s276 = scalar_lea.vmem %s0, %s275
        %v277 = vld [vmem:[%s276] sm:$0xff]
        %v278 = vld [vmem:[%s276 + $0x8] sm:$0xff]
        %v279 = vadd.f32 %v277, %v278
        %280 = vadd.xlane.f32.xlu0 %v279
        %v281 = vpop.xlane.xlu0 %280
        %v282 = vmul.f32 %v281, 0.00390625
        %v283 = vld [vmem:[%s1] sm:$0x3]
        %v284 = vld [vmem:[%s2] sm:$0x3]
        %vm285 = vcmask 64512
        %v287 = vsel %vm285, %v283, 0
        %289 = vmatprep.subr.mxu0 0.0
        %290 = vmatpush1.msra.mxu0 %v282
        %291 = vmatprep.subr.mxu0 0.0
        %292 = vmatpush1.msra.mxu0 0.0
        %293 = vmatprep.subr.mxu0 0.0
        %294 = vmatpush1.msra.mxu0 0.0
        %295 = vmatprep.subr.mxu0 0.0
        %296 = vmatpush1.msra.mxu0 0.0
        %297 = vmatprep.subr.mxu0 0.0
        %298 = vmatpush1.msra.mxu0 0.0
        %299 = vmatprep.subr.mxu0 0.0
        %300 = vmatpush1.msra.mxu0 0.0
        %301 = vmatprep.subr.mxu0 0.0
        %302 = vmatpush1.msra.mxu0 0.0
        %303 = vmatprep.subr.mxu0 0.0
        %304 = vmatpush1.msra.mxu0 0.0
        %305 = vmatprep.subr.mxu0 0.0
        %306 = vmatpush1.msra.mxu0 0.0
        %307 = vmatprep.subr.mxu0 0.0
        %308 = vmatpush1.msra.mxu0 0.0
        %309 = vmatprep.subr.mxu0 0.0
        %310 = vmatpush1.msra.mxu0 0.0
        %311 = vmatprep.subr.mxu0 0.0
        %312 = vmatpush1.msra.mxu0 0.0
        %313 = vmatprep.subr.mxu0 0.0
        %314 = vmatpush1.msra.mxu0 0.0
        %315 = vmatprep.subr.mxu0 0.0
        %316 = vmatpush1.msra.mxu0 0.0
        %317 = vmatprep.subr.mxu0 0.0
        %318 = vmatpush1.msra.mxu0 0.0
        %319 = vmatprep.subr.mxu0 0.0
        %320 = vmatpush1.msra.mxu0 0.0
        %321 = vmatprep.subr.mxu0 0.0
        %322 = vmatpush1.msra.mxu0 0.0
        %323 = vmatprep.subr.mxu0 0.0
        %324 = vmatpush1.msra.mxu0 0.0
        %325 = vmatprep.subr.mxu0 0.0
        %326 = vmatpush1.msra.mxu0 0.0
        %327 = vmatprep.subr.mxu0 0.0
        %328 = vmatpush1.msra.mxu0 0.0
        %329 = vmatprep.subr.mxu0 0.0
        %330 = vmatpush1.msra.mxu0 0.0
        %331 = vmatprep.subr.mxu0 0.0
        %332 = vmatpush1.msra.mxu0 0.0
        %333 = vmatprep.subr.mxu0 0.0
        %334 = vmatpush1.msra.mxu0 0.0
        %335 = vmatprep.subr.mxu0 0.0
        %336 = vmatpush1.msra.mxu0 0.0
        %337 = vmatprep.subr.mxu0 0.0
        %338 = vmatpush1.msra.mxu0 0.0
        %339 = vmatprep.subr.mxu0 0.0
        %340 = vmatpush1.msra.mxu0 0.0
        %341 = vmatprep.subr.mxu0 0.0
        %342 = vmatpush1.msra.mxu0 0.0
        %343 = vmatprep.subr.mxu0 0.0
        %344 = vmatpush1.msra.mxu0 0.0
        %345 = vmatprep.subr.mxu0 0.0
        %346 = vmatpush1.msra.mxu0 0.0
        %347 = vmatprep.subr.mxu0 0.0
        %348 = vmatpush1.msra.mxu0 0.0
        %349 = vmatprep.subr.mxu0 0.0
        %350 = vmatpush1.msra.mxu0 0.0
        %351 = vmatprep.subr.mxu0 0.0
        %352 = vmatpush1.msra.mxu0 0.0
        %353 = vmatprep.mubr.f32.mxu0 0.0
        %354 = vmatmul.mubr.f32.gmra.mrb[0].mxu0 %v287
        %v355 = vpop.f32.mrb[0].mxu0
        %v356 = vadd.f32 %v284, %v355
        %v357 = vpop.f32.mrb[0].mxu0
        %358 = vdwg.mxu0
        %v359 = vmax.f32 %v356, 0.0
        %v360 = vld [vmem:[%s3] sm:$0xff]
        %v361 = vld [vmem:[%s3 + $0x8] sm:$0xff]
        %v362 = vld [vmem:[%s3 + $0x10] sm:$0xff]
        %v363 = vld [vmem:[%s3 + $0x18] sm:$0xff]
        %v364 = vld [vmem:[%s4] sm:$0xff]
        %v365 = vld [vmem:[%s4 + $0x8] sm:$0xff]
        %v366 = vld [vmem:[%s4 + $0x10] sm:$0xff]
        %v367 = vld [vmem:[%s4 + $0x18] sm:$0xff]
        %vm368 = vcmask 15360
        %v370 = vsel %vm368, %v360, 0
        %v373 = vsel %vm368, %v361, 0
        %v376 = vsel %vm368, %v362, 0
        %v379 = vsel %vm368, %v363, 0
        %vm381 = vcmask 1041408
        %v383 = vsel %vm381, %v359, 0
        %385 = vmatprep.subr.mxu0 0.0
        %386 = vmatpush1.msra.mxu0 %v383
        %387 = vmatprep.subr.mxu0 0.0
        %388 = vmatpush1.msra.mxu0 0.0
        %389 = vmatprep.subr.mxu0 0.0
        %390 = vmatpush1.msra.mxu0 0.0
        %391 = vmatprep.subr.mxu0 0.0
        %392 = vmatpush1.msra.mxu0 0.0
        %393 = vmatprep.subr.mxu0 0.0
        %394 = vmatpush1.msra.mxu0 0.0
        %395 = vmatprep.subr.mxu0 0.0
        %396 = vmatpush1.msra.mxu0 0.0
        %397 = vmatprep.subr.mxu0 0.0
        %398 = vmatpush1.msra.mxu0 0.0
        %399 = vmatprep.subr.mxu0 0.0
        %400 = vmatpush1.msra.mxu0 0.0
        %401 = vmatprep.subr.mxu0 0.0
        %402 = vmatpush1.msra.mxu0 0.0
        %403 = vmatprep.subr.mxu0 0.0
        %404 = vmatpush1.msra.mxu0 0.0
        %405 = vmatprep.subr.mxu0 0.0
        %406 = vmatpush1.msra.mxu0 0.0
        %407 = vmatprep.subr.mxu0 0.0
        %408 = vmatpush1.msra.mxu0 0.0
        %409 = vmatprep.subr.mxu0 0.0
        %410 = vmatpush1.msra.mxu0 0.0
        %411 = vmatprep.subr.mxu0 0.0
        %412 = vmatpush1.msra.mxu0 0.0
        %413 = vmatprep.subr.mxu0 0.0
        %414 = vmatpush1.msra.mxu0 0.0
        %415 = vmatprep.subr.mxu0 0.0
        %416 = vmatpush1.msra.mxu0 0.0
        %417 = vmatprep.subr.mxu0 0.0
        %418 = vmatpush1.msra.mxu0 0.0
        %419 = vmatprep.subr.mxu0 0.0
        %420 = vmatpush1.msra.mxu0 0.0
        %421 = vmatprep.subr.mxu0 0.0
        %422 = vmatpush1.msra.mxu0 0.0
        %423 = vmatprep.subr.mxu0 0.0
        %424 = vmatpush1.msra.mxu0 0.0
        %425 = vmatprep.subr.mxu0 0.0
        %426 = vmatpush1.msra.mxu0 0.0
        %427 = vmatprep.subr.mxu0 0.0
        %428 = vmatpush1.msra.mxu0 0.0
        %429 = vmatprep.subr.mxu0 0.0
        %430 = vmatpush1.msra.mxu0 0.0
        %431 = vmatprep.subr.mxu0 0.0
        %432 = vmatpush1.msra.mxu0 0.0
        %433 = vmatprep.subr.mxu0 0.0
        %434 = vmatpush1.msra.mxu0 0.0
        %435 = vmatprep.subr.mxu0 0.0
        %436 = vmatpush1.msra.mxu0 0.0
        %437 = vmatprep.subr.mxu0 0.0
        %438 = vmatpush1.msra.mxu0 0.0
        %439 = vmatprep.subr.mxu0 0.0
        %440 = vmatpush1.msra.mxu0 0.0
        %441 = vmatprep.subr.mxu0 0.0
        %442 = vmatpush1.msra.mxu0 0.0
        %443 = vmatprep.subr.mxu0 0.0
        %444 = vmatpush1.msra.mxu0 0.0
        %445 = vmatprep.subr.mxu0 0.0
        %446 = vmatpush1.msra.mxu0 0.0
        %447 = vmatprep.subr.mxu0 0.0
        %448 = vmatpush1.msra.mxu0 0.0
        %449 = vmatprep.mubr.f32.mxu0 0.0
        %450 = vmatmul.mubr.f32.gmra.mrb[0].mxu0 %v370
        %v451 = vpop.f32.mrb[0].mxu0
        %v452 = vadd.f32 %v364, %v451
        %v453 = vpop.f32.mrb[0].mxu0
        %454 = vmatprep.mubr.f32.mxu0 0.0
        %455 = vmatmul.mubr.f32.gmra.mrb[0].mxu0 %v373
        %v456 = vpop.f32.mrb[0].mxu0
        %v457 = vadd.f32 %v365, %v456
        %v458 = vpop.f32.mrb[0].mxu0
        %459 = vmatprep.mubr.f32.mxu0 0.0
        %460 = vmatmul.mubr.f32.gmra.mrb[0].mxu0 %v376
        %v461 = vpop.f32.mrb[0].mxu0
        %v462 = vadd.f32 %v366, %v461
        %v463 = vpop.f32.mrb[0].mxu0
        %464 = vmatprep.mubr.f32.mxu0 0.0
        %465 = vmatmul.mubr.f32.gmra.mrb[0].mxu0 %v379
        %v466 = vpop.f32.mrb[0].mxu0
        %v467 = vadd.f32 %v367, %v466
        %v468 = vpop.f32.mrb[0].mxu0
        %469 = vdwg.mxu0
        %v470 = vmul.f32 %v452, 0.5
        %v471 = vmul.f32 %v457, 0.5
        %v472 = vmul.f32 %v462, 0.5
        %v473 = vmul.f32 %v467, 0.5
        %v474 = vtanh.pop %v470
        %v475 = vtanh.pop %v471
        %v476 = vtanh.pop %v472
        %v477 = vtanh.pop %v473
        %v478 = vld [vmem:[%s5] sm:$0xff]
        %v479 = vld [vmem:[%s5 + $0x8] sm:$0xff]
        %v480 = vld [vmem:[%s5 + $0x10] sm:$0xff]
        %v481 = vld [vmem:[%s5 + $0x18] sm:$0xff]
        %v482 = vmul.f32 %v474, %v478
        %v483 = vmul.f32 %v475, %v479
        %v484 = vmul.f32 %v476, %v480
        %v485 = vmul.f32 %v477, %v481
        %v486 = vld [vmem:[%s6] sm:$0xff]
        %v487 = vld [vmem:[%s6 + $0x8] sm:$0xff]
        %v488 = vld [vmem:[%s6 + $0x10] sm:$0xff]
        %v489 = vld [vmem:[%s6 + $0x18] sm:$0xff]
        %v490 = vadd.f32 %v482, %v486
        %v491 = vadd.f32 %v483, %v487
        %v492 = vadd.f32 %v484, %v488
        %v493 = vadd.f32 %v485, %v489
        %495 = vset.pattern.permute.xlu0 0
        %496 = vperm.xlu0 %495, %v490
        %v497 = vpop.permute.xlu0 %496
        %v499 = vmul.f32 %v277, %v497
        %v500 = vmul.f32 %v278, %v497
        %502 = vset.pattern.permute.xlu0 0
        %503 = vperm.xlu0 %502, %v492
        %v504 = vpop.permute.xlu0 %503
        %v506 = vadd.f32 %v499, %v504
        %v507 = vadd.f32 %v500, %v504
        %509 = vset.pattern.permute.xlu0 0
        %510 = vperm.xlu0 %509, %v491
        %v511 = vpop.permute.xlu0 %510
        %v513 = vmul.f32 %v277, %v511
        %v514 = vmul.f32 %v278, %v511
        %516 = vset.pattern.permute.xlu0 0
        %517 = vperm.xlu0 %516, %v493
        %v518 = vpop.permute.xlu0 %517
        %v520 = vadd.f32 %v513, %v518
        %v521 = vadd.f32 %v514, %v518
        %v522 = vmax.f32 %v506, %v520
        %v523 = vmax.f32 %v507, %v521
        %524 = vst [vmem:[%s271] sm:$0xff] %v522
        %525 = vst [vmem:[%s271 + $0x8] sm:$0xff] %v523
        %s526 = sand.u32 %s181, 1
        %s527 = scalar_lea.sflag [#allocation3], %s526
        %s528 = sand.u32 %s181, 1
        %s529 = smul.addr %s528, 16
        %s530 = scalar_lea.vmem [#allocation2], %s529
        // Predicated region
        $region49: #{tpu_custom_call.1} parent=47 // pred_check
          %p531 = pneg %p191
        $region50: #{tpu_custom_call.1} parent=47 // pred_check_branch
          %533 = sbr.rel (%p531) target = $region52
        $region51: #{tpu_custom_call.1} parent=47 // pred_region
          %s535 = ssub.s32 256, 256
          %536 = vsyncadd %s527, %s535
          %s537 = smul.addr %s21, 2
          %s538 = smul.addr %s537, 128
          %s539 = scalar_lea.hbm %s7, %s538
          %s541 = sshll.u32 %s530, 4
          %s542 = int_to_ptr.vmem [resolvable:$true] %s541
          %544 = dma.vmem_to_hbm [thread:$0]  %s542, 256, %s539, %s527
        $region52: #{tpu_custom_call.1} parent=47 // pred_fallthru
          _
      $region48: #{tpu_custom_call.1} parent=5 // pred_fallthru
        _
      %p545 = scmp.le.s32.totalorder 2, %s16
      // Predicated region
      $region53: #{tpu_custom_call.1} parent=5 // pred_check
        %p546 = pneg %p545
      $region54: #{tpu_custom_call.1} parent=5 // pred_check_branch
        %548 = sbr.rel (%p546) target = $region56
      $region55: #{tpu_custom_call.1} parent=5 // pred_region
        %s549 = ssub.s32 %s16, 2
        // Predicated region
        $region57: #{tpu_custom_call.1} parent=55 // pred_check
          %p550 = pneg %p197
        $region58: #{tpu_custom_call.1} parent=55 // pred_check_branch
          %552 = sbr.rel (%p550) target = $region60
        $region59: #{tpu_custom_call.1} parent=55 // pred_region
          %s553 = sand.u32 %s182, 1
          %s554 = scalar_lea.sflag [#allocation3], %s553
          %s555 = sand.u32 %s182, 1
          %s556 = smul.addr %s555, 16
          %s557 = scalar_lea.vmem [#allocation2], %s556
          %558 = dma.done %s554, 256
        $region60: #{tpu_custom_call.1} parent=55 // pred_fallthru
          _
      $region56: #{tpu_custom_call.1} parent=5 // pred_fallthru
        _
    $region6: #{tpu_custom_call.1} parent=1 // loop_footer
      %s20 = sadd.s32 1, %s16
    $region7: #{tpu_custom_call.1} parent=1 // loop_footer_branch
      %15 = sbr.rel target = $region3
    $region8: #{tpu_custom_call.1} parent=1 // loop_exit
      _
    %559 = vsyncpa [#allocation3], 1
    %s560 = scalar_lea.sflag [#allocation3], 1
    %561 = vsyncpa %s560, 1

</llo_original>
